<compile_context>
chip_gen: v7x
topology: tpu7x:2x2x1
jax: 0.10.0
libtpu: 0.0.40
codegen_flags: <defaults>
</compile_context>

<pallas_src>
import jax
import jax.numpy as jnp
from jax.experimental import pallas as pl
from jax.experimental.pallas import tpu as pltpu

EPS = 1e-5


def _stats_kernel(x_ref, sum_ref, sq_ref):
    """Per-channel partial sums over one (bn, C, t_hw) block.

    Accumulates across the HW-tile grid axis (axis 1, "arbitrary"); the
    row-block axis (axis 0, "parallel") indexes the partial-sum output rows,
    so megacore sharding never races on an accumulator.
    """
    @pl.when(pl.program_id(1) == 0)
    def _():
        sum_ref[...] = jnp.zeros_like(sum_ref)
        sq_ref[...] = jnp.zeros_like(sq_ref)

    x = x_ref[...].astype(jnp.float32)                    # (bn, C, t_hw)
    # Lane reduce (XLU) then a cheap add over the leading block rows (VPU).
    s = jnp.sum(x, axis=2, keepdims=True)                 # (bn, C, 1)
    q = jnp.sum(x * x, axis=2, keepdims=True)             # (bn, C, 1)
    sum_ref[...] += jnp.sum(s, axis=0, keepdims=True)     # (1, C, 1)
    sq_ref[...] += jnp.sum(q, axis=0, keepdims=True)      # (1, C, 1)


def _norm_kernel(x_ref, scale_ref, shift_ref, o_ref):
    """y = x * scale + shift with per-channel (1, C, 1) scale/shift."""
    x = x_ref[...].astype(jnp.float32)                    # (bn, C, t_hw)
    o_ref[...] = (x * scale_ref[...] + shift_ref[...]).astype(o_ref.dtype)


def _pick_hw_tile(hw, max_tile=2048):
    """Largest lane-dense tile (multiple of 128) dividing hw, else full hw."""
    if hw <= max_tile:
        return hw
    t = (max_tile // 128) * 128
    while t >= 128:
        if hw % t == 0:
            return t
        t -= 128
    return hw


def _pick_row_tile(n, row_bytes, target_bytes=2 << 20):
    """Largest divisor of n whose block stays under ~target_bytes."""
    cap = max(1, target_bytes // max(row_bytes, 1))
    bn = int(min(n, cap))
    while n % bn:
        bn -= 1
    return bn


def batchnorm2d_ext(x, gamma, beta, *, eps=EPS, block_rows=None, block_hw=None):
    """Forward pass of BatchNorm2DExt for x of shape (B, T, C, H, W)."""
    B, T, C, H, W = x.shape
    N = B * T
    HW = H * W

    # Free reshape (no data movement): channels stay in place, the flattened
    # spatial axis lands on the lane (last) axis so tiles are lane-dense.
    x3 = x.reshape(N, C, HW)

    t_hw = block_hw if block_hw is not None else _pick_hw_tile(HW)
    assert HW % t_hw == 0 and (t_hw == HW or t_hw % 128 == 0)
    itemsize = jnp.dtype(x.dtype).itemsize
    row_bytes = C * t_hw * max(itemsize, 4)       # f32 working-copy size
    bn = block_rows if block_rows is not None else _pick_row_tile(N, row_bytes)
    assert N % bn == 0

    g_n, g_hw = N // bn, HW // t_hw
    blk_bytes = bn * row_bytes
    # Double-buffered in + out blocks plus headroom; with the ~2 MiB default
    # block target this fits v5e's 16 MiB scoped default and stays well under
    # v7x's 64 MiB physical VMEM even if larger blocks are requested.
    vmem_budget = int(min(max(6 * blk_bytes + (4 << 20), 16 << 20), 40 << 20))

    # Pass 1: per-channel partial sums / sum-of-squares, one row per row-block.
    psum, psq = pl.pallas_call(
        _stats_kernel,
        out_shape=(jax.ShapeDtypeStruct((g_n, C, 1), jnp.float32),
                   jax.ShapeDtypeStruct((g_n, C, 1), jnp.float32)),
        grid_spec=pltpu.PrefetchScalarGridSpec(
            num_scalar_prefetch=0,
            grid=(g_n, g_hw),
            in_specs=[pl.BlockSpec((bn, C, t_hw), lambda i, j: (i, 0, j))],
            out_specs=(pl.BlockSpec((1, C, 1), lambda i, j: (i, 0, 0)),
                       pl.BlockSpec((1, C, 1), lambda i, j: (i, 0, 0)))),
        compiler_params=pltpu.CompilerParams(
            dimension_semantics=("parallel", "arbitrary"),
            vmem_limit_bytes=vmem_budget),
    )(x3)

    # Tiny epilogue on (C,)-sized arrays: combine partials and fold the batch
    # statistics + affine params into a single per-channel scale/shift.
    cnt = jnp.float32(N * HW)
    s = jnp.sum(psum, axis=0).reshape(C)
    q = jnp.sum(psq, axis=0).reshape(C)
    mean = s / cnt
    var = q / cnt - mean * mean           # biased variance (training-mode BN)
    scale = gamma.astype(jnp.float32) * jax.lax.rsqrt(var + eps)
    shift = beta.astype(jnp.float32) - mean * scale
    scale3 = scale.reshape(1, C, 1)
    shift3 = shift.reshape(1, C, 1)

    # Pass 2: purely elementwise fused multiply-add, fully parallel grid.
    y3 = pl.pallas_call(
        _norm_kernel,
        out_shape=jax.ShapeDtypeStruct((N, C, HW), x.dtype),
        grid_spec=pltpu.PrefetchScalarGridSpec(
            num_scalar_prefetch=0,
            grid=(g_n, g_hw),
            in_specs=[pl.BlockSpec((bn, C, t_hw), lambda i, j: (i, 0, j)),
                      pl.BlockSpec((1, C, 1), lambda i, j: (0, 0, 0)),
                      pl.BlockSpec((1, C, 1), lambda i, j: (0, 0, 0))],
            out_specs=pl.BlockSpec((bn, C, t_hw), lambda i, j: (i, 0, j))),
        compiler_params=pltpu.CompilerParams(
            dimension_semantics=("parallel", "parallel"),
            vmem_limit_bytes=vmem_budget),
    )(x3, scale3, shift3)

    # Free reshape back to (B, T, C, H, W).
    return y3.reshape(B, T, C, H, W)


if __name__ == "__main__":
    key = jax.random.PRNGKey(0)
    kx, kg, kb = jax.random.split(key, 3)

    B, T, C, H, W = 2, 8, 4, 16, 16
    x = jax.random.normal(kx, (B, T, C, H, W), dtype=jnp.float32) * 2.0 + 0.5
    # nn.BatchNorm2d(C) parameters: weight (C,), bias (C,) — deterministic.
    gamma = 1.0 + 0.1 * jax.random.normal(kg, (C,), dtype=jnp.float32)
    beta = 0.1 * jax.random.normal(kb, (C,), dtype=jnp.float32)

    # Small explicit blocks so the test exercises both grid axes (accumulation
    # across HW tiles and partial-sum combination across row blocks); real
    # workloads use the auto-picked ~2 MiB blocks.
    y = jax.block_until_ready(
        batchnorm2d_ext(x, gamma, beta, block_rows=4, block_hw=128))

    # Pure-JAX reference (training-mode BatchNorm2d over the merged B*T batch).
    xr = x.reshape(B * T, C, H, W)
    mean = xr.mean(axis=(0, 2, 3))
    var = xr.var(axis=(0, 2, 3))          # biased variance, as used to normalize
    ref = (xr - mean[None, :, None, None]) * jax.lax.rsqrt(
        var + EPS)[None, :, None, None]
    ref = ref * gamma[None, :, None, None] + beta[None, :, None, None]
    ref = ref.reshape(x.shape)

    assert jnp.max(jnp.abs(y - ref)) < 1e-4, "mismatch vs reference"
    print("KERNEL_OK")
</pallas_src>

<mosaic_0001>
module attributes {stable_mosaic.version = 11 : i64} {
  func.func @_stats_kernel(%arg0: i32, %arg1: i32, %arg2: memref<4x4x128xf32, #tpu.memory_space<vmem>>, %arg3: memref<1x4x1xf32, #tpu.memory_space<vmem>>, %arg4: memref<1x4x1xf32, #tpu.memory_space<vmem>>) attributes {dimension_semantics = [#tpu.dimension_semantics<parallel>, #tpu.dimension_semantics<arbitrary>], iteration_bounds = array<i64: 4, 2>, scalar_prefetch = 0 : i64, scratch_operands = 0 : i64, tpu.core_type = #tpu.core_type<tc>, window_params = [{transform_indices = @transform_0, window_bounds = array<i64: 4, 4, 128>}, {transform_indices = @transform_1, window_bounds = array<i64: 1, 4, 1>}, {transform_indices = @transform_2, window_bounds = array<i64: 1, 4, 1>}]} {
    %c0_i32 = arith.constant 0 : i32
    %0 = arith.cmpi eq, %arg1, %c0_i32 : i32
    %1 = arith.extui %0 : i1 to i32
    %c0_i32_0 = arith.constant 0 : i32
    %2 = arith.cmpi ne, %1, %c0_i32_0 : i32
    scf.if %2 {
      %cst_18 = arith.constant 0.000000e+00 : f32
      %19 = vector.broadcast %cst_18 : f32 to vector<1x4x1xf32>
      %c0_19 = arith.constant 0 : index
      %c0_20 = arith.constant 0 : index
      %c0_21 = arith.constant 0 : index
      %20 = vector.load %arg3[%c0_19, %c0_20, %c0_21] : memref<1x4x1xf32, #tpu.memory_space<vmem>>, vector<1x4x1xf32>
      tpu.vector_store %arg3[%c0_19, %c0_20, %c0_21], %19 {strides = array<i32>} : memref<1x4x1xf32, #tpu.memory_space<vmem>>, vector<1x4x1xf32>,
      %cst_22 = arith.constant 0.000000e+00 : f32
      %21 = vector.broadcast %cst_22 : f32 to vector<1x4x1xf32>
      %c0_23 = arith.constant 0 : index
      %c0_24 = arith.constant 0 : index
      %c0_25 = arith.constant 0 : index
      %22 = vector.load %arg4[%c0_23, %c0_24, %c0_25] : memref<1x4x1xf32, #tpu.memory_space<vmem>>, vector<1x4x1xf32>
      tpu.vector_store %arg4[%c0_23, %c0_24, %c0_25], %21 {strides = array<i32>} : memref<1x4x1xf32, #tpu.memory_space<vmem>>, vector<1x4x1xf32>,
    } else {
    }
    %c0 = arith.constant 0 : index
    %c0_1 = arith.constant 0 : index
    %c0_2 = arith.constant 0 : index
    %3 = vector.load %arg2[%c0, %c0_1, %c0_2] : memref<4x4x128xf32, #tpu.memory_space<vmem>>, vector<4x4x128xf32>
    %cst = arith.constant dense<0.000000e+00> : vector<4x4xf32>
    %4 = vector.multi_reduction <add>, %3, %cst [2] : vector<4x4x128xf32> to vector<4x4xf32>
    %5 = vector.shape_cast %4 : vector<4x4xf32> to vector<4x4x1xf32>
    %6 = arith.mulf %3, %3 : vector<4x4x128xf32>
    %cst_3 = arith.constant dense<0.000000e+00> : vector<4x4xf32>
    %7 = vector.multi_reduction <add>, %6, %cst_3 [2] : vector<4x4x128xf32> to vector<4x4xf32>
    %8 = vector.shape_cast %7 : vector<4x4xf32> to vector<4x4x1xf32>
    %c0_4 = arith.constant 0 : index
    %c0_5 = arith.constant 0 : index
    %c0_6 = arith.constant 0 : index
    %9 = vector.load %arg3[%c0_4, %c0_5, %c0_6] : memref<1x4x1xf32, #tpu.memory_space<vmem>>, vector<1x4x1xf32>
    %cst_7 = arith.constant dense<0.000000e+00> : vector<4x1xf32>
    %10 = vector.multi_reduction <add>, %5, %cst_7 [0] : vector<4x4x1xf32> to vector<4x1xf32>
    %11 = vector.shape_cast %10 : vector<4x1xf32> to vector<1x4x1xf32>
    %12 = arith.addf %9, %11 : vector<1x4x1xf32>
    %c0_8 = arith.constant 0 : index
    %c0_9 = arith.constant 0 : index
    %c0_10 = arith.constant 0 : index
    %13 = vector.load %arg3[%c0_8, %c0_9, %c0_10] : memref<1x4x1xf32, #tpu.memory_space<vmem>>, vector<1x4x1xf32>
    tpu.vector_store %arg3[%c0_8, %c0_9, %c0_10], %12 {strides = array<i32>} : memref<1x4x1xf32, #tpu.memory_space<vmem>>, vector<1x4x1xf32>,
    %c0_11 = arith.constant 0 : index
    %c0_12 = arith.constant 0 : index
    %c0_13 = arith.constant 0 : index
    %14 = vector.load %arg4[%c0_11, %c0_12, %c0_13] : memref<1x4x1xf32, #tpu.memory_space<vmem>>, vector<1x4x1xf32>
    %cst_14 = arith.constant dense<0.000000e+00> : vector<4x1xf32>
    %15 = vector.multi_reduction <add>, %8, %cst_14 [0] : vector<4x4x1xf32> to vector<4x1xf32>
    %16 = vector.shape_cast %15 : vector<4x1xf32> to vector<1x4x1xf32>
    %17 = arith.addf %14, %16 : vector<1x4x1xf32>
    %c0_15 = arith.constant 0 : index
    %c0_16 = arith.constant 0 : index
    %c0_17 = arith.constant 0 : index
    %18 = vector.load %arg4[%c0_15, %c0_16, %c0_17] : memref<1x4x1xf32, #tpu.memory_space<vmem>>, vector<1x4x1xf32>
    tpu.vector_store %arg4[%c0_15, %c0_16, %c0_17], %17 {strides = array<i32>} : memref<1x4x1xf32, #tpu.memory_space<vmem>>, vector<1x4x1xf32>,
    return
  }
  func.func @transform_0(%arg0: i32, %arg1: i32) -> (i32, i32, i32) {
    %c0_i32 = arith.constant 0 : i32
    %c0_i32_0 = arith.constant 0 : i32
    return %arg0, %c0_i32, %arg1 : i32, i32, i32
  }
  func.func @transform_1(%arg0: i32, %arg1: i32) -> (i32, i32, i32) {
    %c0_i32 = arith.constant 0 : i32
    %c0_i32_0 = arith.constant 0 : i32
    %c0_i32_1 = arith.constant 0 : i32
    return %arg0, %c0_i32, %c0_i32_0 : i32, i32, i32
  }
  func.func @transform_2(%arg0: i32, %arg1: i32) -> (i32, i32, i32) {
    %c0_i32 = arith.constant 0 : i32
    %c0_i32_0 = arith.constant 0 : i32
    %c0_i32_1 = arith.constant 0 : i32
    return %arg0, %c0_i32, %c0_i32_0 : i32, i32, i32
  }
}

</mosaic_0001>

<llo_original>
// kernel: tpu_custom_call.1
$region0: #{tpu_custom_call.1}
  #allocation0 [shape = 'u32[]', space=smem, size = 0x4, offset = 0x4, fixed_abs, tag = 'smem constant byte address 0x4 - core index']
  #allocation1 [shape = 'u32[144,128]{1,0:T(1,128)}', space=vmem, size = 0x12000, scoped, tag = 'internal scratch']
  %s0 = inlined_call_operand.hbm [shape: f32[16,4,256], index: 0, kind: input, shape index: {}]
  %s1 = inlined_call_operand.vmem [shape: f32[4,4,1], index: 1, kind: output, shape index: {0}]
  %s2 = inlined_call_operand.vmem [shape: f32[4,4,1], index: 2, kind: output, shape index: {1}]
  %3 = xla_tuple %s1, %s2
  %s4 = sld [smem:[#allocation0]]
  $region53: #{tpu_custom_call.1} parent=0
    _
  %s6 = ssub.s32 1, %s4
  %s7 = scalar_select 0, %s6, %s4
  $region1: #{tpu_custom_call.1} parent=0
    #allocation2 [shape = 'u8[16384]{0}', space=vmem, size = 0x4000, scoped, tag = 'input window, operand 0']
    #allocation3 [shape = 's32[2]{0}', space=sflag, size = 0x8, scoped, tag = 'scoped memory for tpu_custom_call.1']
    %8 = vsyncpa [#allocation3], 0
    %s9 = scalar_lea.sflag [#allocation3], 1
    %10 = vsyncpa %s9, 0
    loop: start=0, step=1, limit=10
    $region2: #{tpu_custom_call.1} parent=1 // loop_pre_header
      _
    $region3: #{tpu_custom_call.1} parent=1 // loop_header
      %s12 = sphi 0, %s16
      %p13 = scmp.ge.s32.totalorder %s12, 10
      %s19 = sphi 0, %s31
      %s20 = sphi 0, %s27
      %s21 = sphi 0, %s19
      %s22 = sphi 0, %s20
      %s23 = sphi 0, %s21
      %s24 = sphi 0, %s22
      %s36 = sphi 0, %s38
      %s39 = sphi 0, %s36
      %s40 = sphi 0, %s39
      %s56 = sphi 0, %s40
      %s62 = sphi 0, %s64
      %s65 = sphi 0, %s62
      %s66 = sphi 0, %s65
      %s82 = sphi 0, %s66
      %s88 = sphi 0, %s90
      %s91 = sphi 0, %s88
      %s92 = sphi 0, %s91
      %s108 = sphi 0, %s92
    $region4: #{tpu_custom_call.1} parent=1 // loop_header_branch
      %15 = sbr.rel (%p13) target = $region8
    $region5: #{tpu_custom_call.1} parent=1 // loop_body
      %s17 = ssub.s32 %s12, 1
      %s18 = ssub.s32 %s12, 2
      %s25 = sadd.s32 1, %s20
      %p26 = scmp.ge.s32.totalorder %s25, 2
      %s27 = scalar_select %p26, 0, %s25
      %s28 = sadd.s32 1, %s19
      %s29 = scalar_select %p26, %s28, %s19
      %p30 = scmp.ge.s32.totalorder %s29, 4
      %s31 = scalar_select %p30, 0, %s29
      %s32 = ssub.s32 %s19, %s31
      %s33 = ssub.s32 %s20, %s27
      %s34 = sor.u32 %s32, %s33
      %p35 = scmp.eq.s32.totalorder %s34, 0
      %s37 = sadd.s32 %s36, 1
      %s38 = scalar_select %p35, %s36, %s37
      %p41 = pneg %p35
      %p42 = scmp.eq.s32.totalorder %s12, 7
      %p43 = por %p41, %p42
      %p44 = scmp.ne.s32.totalorder %s36, %s39
      %p45 = scmp.eq.s32.totalorder %s12, 0
      %p46 = por %p44, %p45
      %p47 = scmp.ne.s32.totalorder %s36, %s39
      %p48 = scmp.eq.s32.totalorder %s17, 7
      %p49 = por %p47, %p48
      %p50 = scmp.ne.s32.totalorder %s39, %s40
      %p51 = scmp.eq.s32.totalorder %s17, 0
      %p52 = por %p50, %p51
      %p53 = scmp.ne.s32.totalorder %s39, %s40
      %p54 = scmp.eq.s32.totalorder %s18, 7
      %p55 = por %p53, %p54
      %p57 = scmp.ne.s32.totalorder %s40, %s56
      %p58 = scmp.eq.s32.totalorder %s18, 0
      %p59 = por %p57, %p58
      %s60 = ssub.s32 %s19, %s31
      %p61 = scmp.eq.s32.totalorder %s60, 0
      %s63 = sadd.s32 %s62, 1
      %s64 = scalar_select %p61, %s62, %s63
      %p67 = pneg %p61
      %p68 = scmp.eq.s32.totalorder %s12, 7
      %p69 = por %p67, %p68
      %p70 = scmp.ne.s32.totalorder %s62, %s65
      %p71 = scmp.eq.s32.totalorder %s12, 0
      %p72 = por %p70, %p71
      %p73 = scmp.ne.s32.totalorder %s62, %s65
      %p74 = scmp.eq.s32.totalorder %s17, 7
      %p75 = por %p73, %p74
      %p76 = scmp.ne.s32.totalorder %s65, %s66
      %p77 = scmp.eq.s32.totalorder %s17, 0
      %p78 = por %p76, %p77
      %p79 = scmp.ne.s32.totalorder %s65, %s66
      %p80 = scmp.eq.s32.totalorder %s18, 7
      %p81 = por %p79, %p80
      %p83 = scmp.ne.s32.totalorder %s66, %s82
      %p84 = scmp.eq.s32.totalorder %s18, 0
      %p85 = por %p83, %p84
      %s86 = ssub.s32 %s19, %s31
      %p87 = scmp.eq.s32.totalorder %s86, 0
      %s89 = sadd.s32 %s88, 1
      %s90 = scalar_select %p87, %s88, %s89
      %p93 = pneg %p87
      %p94 = scmp.eq.s32.totalorder %s12, 7
      %p95 = por %p93, %p94
      %p96 = scmp.ne.s32.totalorder %s88, %s91
      %p97 = scmp.eq.s32.totalorder %s12, 0
      %p98 = por %p96, %p97
      %p99 = scmp.ne.s32.totalorder %s88, %s91
      %p100 = scmp.eq.s32.totalorder %s17, 7
      %p101 = por %p99, %p100
      %p102 = scmp.ne.s32.totalorder %s91, %s92
      %p103 = scmp.eq.s32.totalorder %s17, 0
      %p104 = por %p102, %p103
      %p105 = scmp.ne.s32.totalorder %s91, %s92
      %p106 = scmp.eq.s32.totalorder %s18, 7
      %p107 = por %p105, %p106
      %p109 = scmp.ne.s32.totalorder %s92, %s108
      %p110 = scmp.eq.s32.totalorder %s18, 0
      %p111 = por %p109, %p110
      %p112 = scmp.le.s32.totalorder 1, %s12
      %p113 = scmp.lt.s32.totalorder %s12, 9
      %p114 = pnand %p112, %p113
      %p115 = pneg %p114
      // Predicated region
      $region9: #{tpu_custom_call.1} parent=5 // pred_check
        _
      $region10: #{tpu_custom_call.1} parent=5 // pred_check_branch
        %117 = sbr.rel (%p114) target = $region12
      $region11: #{tpu_custom_call.1} parent=5 // pred_region
        %s118 = ssub.s32 %s12, 1
      $region12: #{tpu_custom_call.1} parent=5 // pred_fallthru
        _
      %p119 = scmp.lt.s32.totalorder %s12, 8
      // Predicated region
      $region13: #{tpu_custom_call.1} parent=5 // pred_check
        %p120 = pneg %p119
      $region14: #{tpu_custom_call.1} parent=5 // pred_check_branch
        %122 = sbr.rel (%p120) target = $region16
      $region15: #{tpu_custom_call.1} parent=5 // pred_region
        // Predicated region
        $region17: #{tpu_custom_call.1} parent=15 // pred_check
          %p123 = pneg %p46
        $region18: #{tpu_custom_call.1} parent=15 // pred_check_branch
          %125 = sbr.rel (%p123) target = $region20
        $region19: #{tpu_custom_call.1} parent=15 // pred_region
          %s126 = sand.u32 %s36, 1
          %s127 = scalar_lea.sflag [#allocation3], %s126
          %s128 = sand.u32 %s36, 1
          %s129 = smul.addr %s128, 16
          %s130 = scalar_lea.vmem [#allocation2], %s129
          %s131 = smul.u32 4, %s19
          %s133 = ssub.s32 256, 256
          %134 = vsyncadd %s127, %s133
          %s135 = smul.addr %s131, 2
          %s136 = sadd.s32 %s20, %s135
          %s137 = smul.addr %s136, 64
          %s138 = scalar_lea.hbm %s0, %s137
          %s139 = sshll.u32 %s130, 4
          %s140 = int_to_ptr.vmem [resolvable:$true] %s139
          %145 = dma.hbm_to_vmem [thread:$0]  %s138, 256, %s140, %s127, 128, 64, 4
        $region20: #{tpu_custom_call.1} parent=15 // pred_fallthru
          _
      $region16: #{tpu_custom_call.1} parent=5 // pred_fallthru
        _
      %p146 = scmp.le.s32.totalorder 1, %s12
      %p147 = scmp.lt.s32.totalorder %s12, 9
      %p148 = pnand %p146, %p147
      %p149 = pneg %p148
      // Predicated region
      $region21: #{tpu_custom_call.1} parent=5 // pred_check
        _
      $region22: #{tpu_custom_call.1} parent=5 // pred_check_branch
        %151 = sbr.rel (%p148) target = $region24
      $region23: #{tpu_custom_call.1} parent=5 // pred_region
        %s152 = ssub.s32 %s12, 1
        %s153 = sand.u32 %s39, 1
        %s154 = scalar_lea.sflag [#allocation3], %s153
        %s155 = sand.u32 %s39, 1
        %s156 = smul.addr %s155, 16
        %s157 = scalar_lea.vmem [#allocation2], %s156
        // Predicated region
        $region25: #{tpu_custom_call.1} parent=23 // pred_check
          %p158 = pneg %p52
        $region26: #{tpu_custom_call.1} parent=23 // pred_check_branch
          %160 = sbr.rel (%p158) target = $region28
        $region27: #{tpu_custom_call.1} parent=23 // pred_region
          %161 = dma.done %s154, 256
        $region28: #{tpu_custom_call.1} parent=23 // pred_fallthru
          _
        %s162 = sand.u32 %s39, 1
        %s163 = scalar_lea.sflag [#allocation3], %s162
        %s164 = sand.u32 %s39, 1
        %s165 = smul.addr %s164, 16
        %s166 = scalar_lea.vmem [#allocation2], %s165
        %p167 = pneg %p52
        %p168 = pneg %p49
        %p169 = pneg %p78
        %p170 = pneg %p75
        %p171 = scmp.lt.s32.totalorder %s21, 3
        %s172 = scalar_select %p171, %s21, 3
        %s173 = smul.addr %s172, 4
        %s174 = scalar_lea.vmem %s1, %s173
        %p175 = pneg %p104
        %p176 = pneg %p101
        %p177 = scmp.lt.s32.totalorder %s21, 3
        %s178 = scalar_select %p177, %s21, 3
        %s179 = smul.addr %s178, 4
        %s180 = scalar_lea.vmem %s2, %s179
        %s181 = smul.u32 4, %s21
        %p182 = scmp.lt.s32.totalorder %s21, 3
        %s183 = scalar_select %p182, %s21, 3
        %s184 = smul.addr %s183, 4
        %s185 = scalar_lea.vmem %s1, %s184
        %p186 = scmp.lt.s32.totalorder %s21, 3
        %s187 = scalar_select %p186, %s21, 3
        %s188 = smul.addr %s187, 4
        %s189 = scalar_lea.vmem %s2, %s188
        %p190 = scmp.eq.s32.totalorder %s22, 0
        // Predicated region
        $region29: #{tpu_custom_call.1} parent=23 // pred_check
          %p191 = pneg %p190
        $region30: #{tpu_custom_call.1} parent=23 // pred_check_branch
          %193 = sbr.rel (%p191) target = $region32
        $region31: #{tpu_custom_call.1} parent=23 // pred_region
          %vm194 = vcmask 3072
          %195 = vst.msk [vmem:[%s185] sm:$0xf] %vm194, 0.0
          %196 = vst.msk [vmem:[%s189] sm:$0xf] %vm194, 0.0
        $region32: #{tpu_custom_call.1} parent=23 // pred_fallthru
          _
        %v197 = vld [vmem:[%s157] sm:$0xf]
        %v198 = vld [vmem:[%s157 + $0x4] sm:$0xf]
        %v199 = vld [vmem:[%s157 + $0x8] sm:$0xf]
        %v200 = vld [vmem:[%s157 + $0xc] sm:$0xf]
        %vm201 = vcmask 1043456
        %v202 = vsel %vm201, %v197, 0.0
        %203 = vadd.xlane.f32.xlu0 %v202
        %v204 = vpop.xlane.xlu0 %203
        %v205 = vsel %vm201, %v198, 0.0
        %206 = vadd.xlane.f32.xlu0 %v205
        %v207 = vpop.xlane.xlu0 %206
        %v208 = vsel %vm201, %v199, 0.0
        %209 = vadd.xlane.f32.xlu0 %v208
        %v210 = vpop.xlane.xlu0 %209
        %v211 = vsel %vm201, %v200, 0.0
        %212 = vadd.xlane.f32.xlu0 %v211
        %v213 = vpop.xlane.xlu0 %212
        %v214 = vmul.f32 %v197, %v197
        %v215 = vmul.f32 %v198, %v198
        %v216 = vmul.f32 %v199, %v199
        %v217 = vmul.f32 %v200, %v200
        %v218 = vsel %vm201, %v214, 0.0
        %219 = vadd.xlane.f32.xlu0 %v218
        %v220 = vpop.xlane.xlu0 %219
        %v221 = vsel %vm201, %v215, 0.0
        %222 = vadd.xlane.f32.xlu0 %v221
        %v223 = vpop.xlane.xlu0 %222
        %v224 = vsel %vm201, %v216, 0.0
        %225 = vadd.xlane.f32.xlu0 %v224
        %v226 = vpop.xlane.xlu0 %225
        %v227 = vsel %vm201, %v217, 0.0
        %228 = vadd.xlane.f32.xlu0 %v227
        %v229 = vpop.xlane.xlu0 %228
        %v230 = vld [vmem:[%s185] sm:$0xf]
        %v231 = vsel %vm201, %v204, 0.0
        %v232 = vsel %vm201, %v207, 0.0
        %v233 = vadd.f32 %v231, %v232
        %v234 = vsel %vm201, %v210, 0.0
        %v235 = vadd.f32 %v233, %v234
        %v236 = vsel %vm201, %v213, 0.0
        %v237 = vadd.f32 %v235, %v236
        %v238 = vadd.f32 %v230, %v237
        %vm239 = vcmask 3072
        %240 = vst.msk [vmem:[%s185] sm:$0xf] %vm239, %v238
        %v241 = vld [vmem:[%s189] sm:$0xf]
        %v242 = vsel %vm201, %v220, 0.0
        %v243 = vsel %vm201, %v223, 0.0
        %v244 = vadd.f32 %v242, %v243
        %v245 = vsel %vm201, %v226, 0.0
        %v246 = vadd.f32 %v244, %v245
        %v247 = vsel %vm201, %v229, 0.0
        %v248 = vadd.f32 %v246, %v247
        %v249 = vadd.f32 %v241, %v248
        %250 = vst.msk [vmem:[%s189] sm:$0xf] %vm239, %v249
        %p251 = scmp.lt.s32.totalorder %s21, 3
        %s252 = scalar_select %p251, %s21, 3
        %s253 = smul.addr %s252, 4
        %s254 = scalar_lea.vmem %s1, %s253
        %p255 = scmp.lt.s32.totalorder %s21, 3
        %s256 = scalar_select %p255, %s21, 3
        %s257 = smul.addr %s256, 4
        %s258 = scalar_lea.vmem %s2, %s257
        // Predicated region
        $region33: #{tpu_custom_call.1} parent=23 // pred_check
          %p259 = pneg %p75
        $region34: #{tpu_custom_call.1} parent=23 // pred_check_branch
          %261 = sbr.rel (%p259) target = $region36
        $region35: #{tpu_custom_call.1} parent=23 // pred_region
          _
        $region36: #{tpu_custom_call.1} parent=23 // pred_fallthru
          _
        // Predicated region
        $region37: #{tpu_custom_call.1} parent=23 // pred_check
          %p262 = pneg %p101
        $region38: #{tpu_custom_call.1} parent=23 // pred_check_branch
          %264 = sbr.rel (%p262) target = $region40
        $region39: #{tpu_custom_call.1} parent=23 // pred_region
          _
        $region40: #{tpu_custom_call.1} parent=23 // pred_fallthru
          _
      $region24: #{tpu_custom_call.1} parent=5 // pred_fallthru
        _
      %p265 = scmp.le.s32.totalorder 2, %s12
      // Predicated region
      $region41: #{tpu_custom_call.1} parent=5 // pred_check
        %p266 = pneg %p265
      $region42: #{tpu_custom_call.1} parent=5 // pred_check_branch
        %268 = sbr.rel (%p266) target = $region44
      $region43: #{tpu_custom_call.1} parent=5 // pred_region
        %s269 = ssub.s32 %s12, 2
        // Predicated region
        $region45: #{tpu_custom_call.1} parent=43 // pred_check
          %p270 = pneg %p81
        $region46: #{tpu_custom_call.1} parent=43 // pred_check_branch
          %272 = sbr.rel (%p270) target = $region48
        $region47: #{tpu_custom_call.1} parent=43 // pred_region
          %p273 = scmp.lt.s32.totalorder %s23, 3
          %s274 = scalar_select %p273, %s23, 3
          %s275 = smul.addr %s274, 4
          %s276 = scalar_lea.vmem %s1, %s275
        $region48: #{tpu_custom_call.1} parent=43 // pred_fallthru
          _
        // Predicated region
        $region49: #{tpu_custom_call.1} parent=43 // pred_check
          %p277 = pneg %p107
        $region50: #{tpu_custom_call.1} parent=43 // pred_check_branch
          %279 = sbr.rel (%p277) target = $region52
        $region51: #{tpu_custom_call.1} parent=43 // pred_region
          %p280 = scmp.lt.s32.totalorder %s23, 3
          %s281 = scalar_select %p280, %s23, 3
          %s282 = smul.addr %s281, 4
          %s283 = scalar_lea.vmem %s2, %s282
        $region52: #{tpu_custom_call.1} parent=43 // pred_fallthru
          _
      $region44: #{tpu_custom_call.1} parent=5 // pred_fallthru
        _
    $region6: #{tpu_custom_call.1} parent=1 // loop_footer
      %s16 = sadd.s32 1, %s12
    $region7: #{tpu_custom_call.1} parent=1 // loop_footer_branch
      %11 = sbr.rel target = $region3
    $region8: #{tpu_custom_call.1} parent=1 // loop_exit
      _
    %284 = vsyncpa [#allocation3], 1
    %s285 = scalar_lea.sflag [#allocation3], 1
    %286 = vsyncpa %s285, 1

</llo_original>
